<compile_context>
chip_gen: v7x
topology: tpu7x:2x2x1
jax: 0.10.0
libtpu: 0.0.40
codegen_flags: <defaults>
</compile_context>

<pallas_src>
import functools

import jax
import jax.numpy as jnp
from jax.experimental import pallas as pl
from jax.experimental.pallas import tpu as pltpu


# ----------------------------- Pallas kernel ------------------------------- #

def _abs_kernel(p_ref, o_ref):
    # PositiveParameters.forward(): return |params| (elementwise, VPU only).
    x = p_ref[...]
    dt = x.dtype
    if jnp.issubdtype(dt, jnp.floating) and dt.itemsize == 2:
        # bf16 / fp16: clear the sign bit directly on the packed vreg.
        # One VALU op; avoids any unpack->f32->repack lowering on v5e.
        u = pltpu.bitcast(x, jnp.uint16)
        o_ref[...] = pltpu.bitcast(u & jnp.uint16(0x7FFF), dt)
    else:
        # f32 (PyTorch default) and integer dtypes.
        o_ref[...] = jnp.abs(x)


# ------------------------------ pallas_call --------------------------------- #

def _abs_call(x2d, *, alias_output=False):
    """Single no-grid pallas_call over a 2-D lane-dense slab."""
    nbytes = x2d.size * x2d.dtype.itemsize
    extra = {}
    if alias_output:
        # Inference-only: reuse the input HBM buffer for the output.
        # NEVER use in a training path (would overwrite the learnable param).
        extra["input_output_aliases"] = {0: 0}
    return pl.pallas_call(
        _abs_kernel,
        out_shape=jax.ShapeDtypeStruct(x2d.shape, x2d.dtype),
        # Whole-array VMEM blocks, single invocation (no grid): zero tiling /
        # pipelining overhead at these tiny sizes, no (8,128) divisibility
        # requirement, and identical on v5e/v6e/v7x.
        in_specs=[pl.BlockSpec(memory_space=pltpu.MemorySpace.VMEM)],
        out_specs=pl.BlockSpec(memory_space=pltpu.MemorySpace.VMEM),
        # Advisory: this call is trivially cheap -- don't serialize around it.
        cost_estimate=pl.CostEstimate(
            flops=x2d.size, transcendentals=0, bytes_accessed=2 * nbytes),
        **extra,
    )(x2d)


# ------------------------------- wrappers ------------------------------------ #

def positive_parameters_forward(params, *, alias_output=False):
    """PositiveParameters.forward(): params of shape (size, 1) -> |params|.

    The (size,1)->(1,size) reshape of a contiguous array is a zero-copy
    bitcast; it only exists to put `size` on the 128-lane axis.
    """
    size, one = params.shape
    assert one == 1, params.shape
    p_row = params.reshape(1, size)            # zero-copy, lane-dense view
    out_row = _abs_call(p_row, alias_output=alias_output)
    return out_row.reshape(size, 1)            # zero-copy back to module shape


def positive_parameters_forward_batched(params_stack, *, alias_output=False):
    """Batched forward: K parameter vectors stacked as (K, size).

    Amortizes the per-call dispatch + Pallas prologue over all K modules
    instead of paying it K times.  K maps to sublanes, size to lanes.
    """
    assert params_stack.ndim == 2, params_stack.shape
    return _abs_call(params_stack, alias_output=alias_output)


def positive_parameters_reference(params):
    """Plain-JAX reference (and what a fused production model should use)."""
    return jnp.abs(params)


# --------------------------------- main -------------------------------------- #

if __name__ == "__main__":
    val_min = 1e-6
    key = jax.random.PRNGKey(0)

    fwd = jax.jit(positive_parameters_forward)
    fwd_batched = jax.jit(positive_parameters_forward_batched)

    # --- single-module forward, f32; 64 = typical, 37 = non-128-multiple ----
    for size in (64, 37):
        # Module initialization: params = abs(val_min * ones(size, 1)).
        params_init = jnp.abs(val_min * jnp.ones((size, 1), jnp.float32))
        # A "trained" parameter state (may hold negatives) to exercise abs().
        key, sub = jax.random.split(key)
        params_trained = jax.random.normal(sub, (size, 1), dtype=jnp.float32)

        for params in (params_init, params_trained):
            out = jax.block_until_ready(fwd(params))
            ref = positive_parameters_reference(params)
            assert out.shape == (size, 1), (out.shape, size)
            assert out.dtype == params.dtype
            assert bool(jnp.all(jnp.isfinite(out)))
            # abs is exact -> bit-exact match with the reference.
            assert bool(jnp.array_equal(out, ref)), "kernel != reference"
            assert bool(jnp.all(out >= 0.0))

    # --- batched: 8 parameter vectors of length 32 in ONE call ---------------
    K, size = 8, 32
    key, sub = jax.random.split(key)
    stack = jax.random.normal(sub, (K, size), dtype=jnp.float32)
    out_b = jax.block_until_ready(fwd_batched(stack))
    assert out_b.shape == (K, size)
    assert bool(jnp.array_equal(out_b, jnp.abs(stack))), "batched != reference"

    # --- bf16 path (sign-bit-mask abs; v5e-friendly lowering) ----------------
    key, sub = jax.random.split(key)
    stack_bf16 = jax.random.normal(sub, (8, 128), jnp.float32).astype(jnp.bfloat16)
    out_bf16 = jax.block_until_ready(fwd_batched(stack_bf16))
    assert out_bf16.dtype == jnp.bfloat16
    assert bool(jnp.array_equal(out_bf16, jnp.abs(stack_bf16))), "bf16 != reference"

    # TODO(synk): nn.Parameter semantics (gradients / in-place training updates)
    # are outside the forward pass and are not modeled here; likewise the
    # inference-only alias_output=True path is intentionally not exercised in a
    # training-style test.
    print("KERNEL_OK")
</pallas_src>

<mosaic_0001>
module attributes {stable_mosaic.version = 11 : i64} {
  func.func @_abs_kernel(%arg0: memref<1x64xf32, #tpu.memory_space<vmem>>, %arg1: memref<1x64xf32, #tpu.memory_space<vmem>>) attributes {dimension_semantics = [], scalar_prefetch = 0 : i64, scratch_operands = 0 : i64, tpu.core_type = #tpu.core_type<tc>} {
    %c0 = arith.constant 0 : index
    %c0_0 = arith.constant 0 : index
    %0 = vector.load %arg0[%c0, %c0_0] : memref<1x64xf32, #tpu.memory_space<vmem>>, vector<1x64xf32>
    %1 = math.absf %0 : vector<1x64xf32>
    %c0_1 = arith.constant 0 : index
    %c0_2 = arith.constant 0 : index
    %2 = vector.load %arg1[%c0_1, %c0_2] : memref<1x64xf32, #tpu.memory_space<vmem>>, vector<1x64xf32>
    tpu.vector_store %arg1[%c0_1, %c0_2], %1 {strides = array<i32>} : memref<1x64xf32, #tpu.memory_space<vmem>>, vector<1x64xf32>,
    return
  }
}

</mosaic_0001>

<llo_original>
// kernel: positive_parameters_forward.1
$region0: #{positive_parameters_forward.1}
  #allocation0 [shape = 'u32[]', space=smem, size = 0x4, offset = 0x4, fixed_abs, tag = 'smem constant byte address 0x4 - core index']
  #allocation1 [shape = 'u32[144,128]{1,0:T(1,128)}', space=vmem, size = 0x12000, scoped, tag = 'internal scratch']
  %s0 = inlined_call_operand.vmem [shape: f32[1,64], index: 0, kind: input, shape index: {}]
  %s1 = inlined_call_operand.hbm [shape: f32[1,64], index: 1, kind: output, shape index: {}]
  %s2 = sld [smem:[#allocation0]]
  $region14: #{positive_parameters_forward.1} parent=0
    _
  %s4 = ssub.s32 1, %s2
  %s5 = scalar_select 0, %s4, %s2
  $region1: #{positive_parameters_forward.1} parent=0
    #allocation2 [shape = 'u8[512]{0}', space=vmem, size = 0x400, scoped, tag = 'output window, operand 0, single buffered']
    #allocation3 [shape = 's32[1]{0}', space=sflag, size = 0x4, scoped, tag = 'scoped memory for positive_parameters_forward.1']
    %6 = vsyncpa [#allocation3], 0
    // Predicated region
    $region2: #{positive_parameters_forward.1} parent=1 // pred_check
      _
    $region3: #{positive_parameters_forward.1} parent=1 // pred_check_branch
      %8 = sbr.rel (0) target = $region5
    $region4: #{positive_parameters_forward.1} parent=1 // pred_region
      _
    $region5: #{positive_parameters_forward.1} parent=1 // pred_fallthru
      _
    %v9 = vld [vmem:[%s0] sm:$0x1]
    %v10 = vand.u32 2147483647, %v9
    %vm11 = vcmask 516096
    %12 = vst.msk [vmem:[#allocation2] sm:$0x1] %vm11, %v10
    // Predicated region
    $region6: #{positive_parameters_forward.1} parent=1 // pred_check
      _
    $region7: #{positive_parameters_forward.1} parent=1 // pred_check_branch
      %14 = sbr.rel (0) target = $region9
    $region8: #{positive_parameters_forward.1} parent=1 // pred_region
      %s16 = ssub.s32 16, 16
      %17 = vsyncadd [#allocation3], %s16
      %s19 = sshll.u32 [#allocation2], 4
      %s20 = int_to_ptr.vmem [resolvable:$true] %s19
      %22 = dma.vmem_to_hbm [thread:$0]  %s20, 16, %s1, [#allocation3]
    $region9: #{positive_parameters_forward.1} parent=1 // pred_fallthru
      _
    // Predicated region
    $region10: #{positive_parameters_forward.1} parent=1 // pred_check
      _
    $region11: #{positive_parameters_forward.1} parent=1 // pred_check_branch
      %24 = sbr.rel (0) target = $region13
    $region12: #{positive_parameters_forward.1} parent=1 // pred_region
      %25 = dma.done [#allocation3], 16
    $region13: #{positive_parameters_forward.1} parent=1 // pred_fallthru
      _
    %26 = vsyncpa [#allocation3], 1

</llo_original>
